<compile_context>
chip_gen: v7x
topology: tpu7x:2x2x1
jax: 0.10.0
libtpu: 0.0.40
codegen_flags: <defaults>
</compile_context>

<pallas_src>
import functools

import jax
import jax.numpy as jnp
from jax.experimental import pallas as pl
from jax.experimental.pallas import tpu as pltpu

NEG_SLOPE = 0.01   # nn.LeakyReLU() default
HIDDEN = 24        # hidden width of Next_gmNN


def _round_up(x, m):
    return ((x + m - 1) // m) * m


def _leaky_relu(h):
    return jnp.where(h > 0, h, NEG_SLOPE * h)


def _mlp_kernel(x_ref, p_ref, o_ref, *, d_in, bias_col):
    # x_ref: [d_in, block_m]   (batch rides on the lane axis)
    # p_ref: [4, HIDDEN, C]    packed weights/biases (see pack_params)
    # o_ref: [1, block_m]
    x = x_ref[...]
    if x.dtype != jnp.float32:
        x = x.astype(jnp.float32)

    # fc1: [24, d_in] @ [d_in, bm] + [24, 1]
    h = jnp.dot(p_ref[0, :, :d_in], x, preferred_element_type=jnp.float32)
    h = _leaky_relu(h + p_ref[0, :, bias_col:bias_col + 1])

    # fc2: [24, 24] @ [24, bm] + [24, 1]
    h = jnp.dot(p_ref[1, :, :HIDDEN], h, preferred_element_type=jnp.float32)
    h = _leaky_relu(h + p_ref[1, :, bias_col:bias_col + 1])

    # fc3: [24, 24] @ [24, bm] + [24, 1]
    h = jnp.dot(p_ref[2, :, :HIDDEN], h, preferred_element_type=jnp.float32)
    h = _leaky_relu(h + p_ref[2, :, bias_col:bias_col + 1])

    # output (24 -> 1): VPU multiply + sublane reduce; keeps the result as a
    # lane-dense [1, block_m] row rather than a lane-sparse N=1 MXU result.
    w4_col = p_ref[3, :, 0:1]                      # [24, 1]  (W4 stored transposed)
    b4 = p_ref[3, 0:1, bias_col:bias_col + 1]      # [1, 1]
    out = jnp.sum(w4_col * h, axis=0, keepdims=True) + b4   # [1, block_m]

    o_ref[...] = out.astype(o_ref.dtype)


def pack_params(params, d_in):
    """Pack the 8 nn.Linear tensors (PyTorch layout: W [out,in], b [out]) into
    a single [4, HIDDEN, C] f32 slab, C = max(HIDDEN, d_in) + 1.

      slab[k, :, :in_k]   = W_k                 (k = 0, 1, 2)
      slab[3, :, 0]       = W4[0, :]            (stored as a column)
      slab[k, :, C-1]     = b_k                 (k = 0, 1, 2)
      slab[3, 0, C-1]     = b4
    """
    w1, b1, w2, b2, w3, b3, w4, b4 = params
    C = max(HIDDEN, d_in) + 1
    slab = jnp.zeros((4, HIDDEN, C), jnp.float32)
    slab = slab.at[0, :, :d_in].set(w1.astype(jnp.float32))
    slab = slab.at[0, :, C - 1].set(b1.astype(jnp.float32))
    slab = slab.at[1, :, :HIDDEN].set(w2.astype(jnp.float32))
    slab = slab.at[1, :, C - 1].set(b2.astype(jnp.float32))
    slab = slab.at[2, :, :HIDDEN].set(w3.astype(jnp.float32))
    slab = slab.at[2, :, C - 1].set(b3.astype(jnp.float32))
    slab = slab.at[3, :, 0].set(w4[0, :].astype(jnp.float32))
    slab = slab.at[3, 0, C - 1].set(b4[0].astype(jnp.float32))
    return slab


def next_gm_nn_forward(x, params, *, block_m=4096):
    """x: [B, d_in] float32 -> [B, 1] float32 (forward pass of Next_gmNN)."""
    B, d_in = x.shape
    slab = pack_params(params, d_in)
    C = slab.shape[-1]

    # Lane-dense batch layout: pad batch up to a multiple of 128, transpose so
    # the batch rides on the lane axis.  Padded lanes never contaminate valid
    # lanes (no cross-batch reduction inside the kernel) and the writeback of
    # any partial last block is masked by Pallas.
    B_pad = _round_up(B, 128)
    bm = min(_round_up(block_m, 128), B_pad)
    xt = jnp.pad(x, ((0, B_pad - B), (0, 0))).T        # [d_in, B_pad]

    grid = (pl.cdiv(B_pad, bm),)
    kernel = pl.pallas_call(
        functools.partial(_mlp_kernel, d_in=d_in, bias_col=C - 1),
        out_shape=jax.ShapeDtypeStruct((1, B_pad), jnp.float32),
        grid_spec=pltpu.PrefetchScalarGridSpec(
            num_scalar_prefetch=0,
            grid=grid,
            in_specs=[
                pl.BlockSpec((d_in, bm), lambda i: (0, i)),      # x^T tile
                pl.BlockSpec((4, HIDDEN, C), lambda i: (0, 0, 0)),  # param slab
            ],
            out_specs=pl.BlockSpec((1, bm), lambda i: (0, i)),
        ),
        compiler_params=pltpu.CompilerParams(
            dimension_semantics=("parallel",)),
    )
    out = kernel(xt, slab)                  # [1, B_pad], lane-dense stores
    return out[0, :B].reshape(B, 1)


def init_params(key, d_in):
    """Deterministic nn.Linear-style init; PyTorch layout: W [out,in], b [out]."""
    def linear(key, fan_in, fan_out):
        kw, kb = jax.random.split(key)
        bound = 1.0 / jnp.sqrt(jnp.float32(fan_in))
        w = jax.random.uniform(kw, (fan_out, fan_in), jnp.float32, -bound, bound)
        b = jax.random.uniform(kb, (fan_out,), jnp.float32, -bound, bound)
        return w, b

    k1, k2, k3, k4 = jax.random.split(key, 4)
    w1, b1 = linear(k1, d_in, HIDDEN)
    w2, b2 = linear(k2, HIDDEN, HIDDEN)
    w3, b3 = linear(k3, HIDDEN, HIDDEN)
    w4, b4 = linear(k4, HIDDEN, 1)
    return (w1, b1, w2, b2, w3, b3, w4, b4)


def reference_forward(x, params):
    """Pure-JAX reference matching the PyTorch module (W [out,in], b [out])."""
    w1, b1, w2, b2, w3, b3, w4, b4 = params
    h = _leaky_relu(x @ w1.T + b1)
    h = _leaky_relu(h @ w2.T + b2)
    h = _leaky_relu(h @ w3.T + b3)
    return h @ w4.T + b4


if __name__ == "__main__":
    key = jax.random.PRNGKey(0)
    k_param, k_x = jax.random.split(key)

    d_in = 4          # VFI state dimension (small feature vector)
    batch = 300       # not a multiple of 128 -> exercises padding + masked tail

    params = init_params(k_param, d_in)
    x = jax.random.normal(k_x, (batch, d_in), jnp.float32)

    out = next_gm_nn_forward(x, params)
    out = jax.block_until_ready(out)

    ref = reference_forward(x, params)
    assert out.shape == (batch, 1)
    assert jnp.allclose(out, ref, atol=1e-5, rtol=1e-5), \
        float(jnp.max(jnp.abs(out - ref)))

    print("KERNEL_OK")
</pallas_src>

<mosaic_0001>
module attributes {stable_mosaic.version = 11 : i64} {
  func.func @_mlp_kernel(%arg0: i32, %arg1: memref<4x384xf32, #tpu.memory_space<vmem>>, %arg2: memref<4x24x25xf32, #tpu.memory_space<vmem>>, %arg3: memref<1x384xf32, #tpu.memory_space<vmem>>) attributes {dimension_semantics = [#tpu.dimension_semantics<parallel>], iteration_bounds = array<i64: 1>, scalar_prefetch = 0 : i64, scratch_operands = 0 : i64, tpu.core_type = #tpu.core_type<tc>, window_params = [{transform_indices = @transform_0, window_bounds = array<i64: 4, 384>}, {pipeline_mode = #tpu.pipeline_mode<synchronous>, transform_indices = @transform_1, window_bounds = array<i64: 4, 24, 25>}, {transform_indices = @transform_2, window_bounds = array<i64: 1, 384>}]} {
    %c0 = arith.constant 0 : index
    %c0_0 = arith.constant 0 : index
    %0 = vector.load %arg1[%c0, %c0_0] : memref<4x384xf32, #tpu.memory_space<vmem>>, vector<4x384xf32>
    %c0_1 = arith.constant 0 : index
    %c0_2 = arith.constant 0 : index
    %c0_3 = arith.constant 0 : index
    %1 = vector.load %arg2[%c0_1, %c0_2, %c0_3] : memref<4x24x25xf32, #tpu.memory_space<vmem>>, vector<1x24x4xf32>
    %2 = vector.shape_cast %1 : vector<1x24x4xf32> to vector<24x4xf32>
    %cst = arith.constant dense<0.000000e+00> : vector<24x384xf32>
    %3 = tpu.matmul %2, %0, %cst {dimension_numbers = #tpu.dot_dimension_numbers<[1], [0], [0], [1], [0, 0, 1, 1], [], []>} : vector<24x4xf32>, vector<4x384xf32>, vector<24x384xf32> -> vector<24x384xf32>
    %c0_4 = arith.constant 0 : index
    %c0_5 = arith.constant 0 : index
    %c24 = arith.constant 24 : index
    %4 = vector.load %arg2[%c0_4, %c0_5, %c24] : memref<4x24x25xf32, #tpu.memory_space<vmem>>, vector<1x24x1xf32>
    %5 = vector.shape_cast %4 : vector<1x24x1xf32> to vector<24x1xf32>
    %6 = vector.broadcast %5 : vector<24x1xf32> to vector<24x384xf32>
    %7 = arith.addf %3, %6 : vector<24x384xf32>
    %cst_6 = arith.constant 0.000000e+00 : f32
    %8 = vector.broadcast %cst_6 : f32 to vector<24x384xf32>
    %9 = arith.cmpf ogt, %7, %8 : vector<24x384xf32>
    %cst_7 = arith.constant 0.00999999977 : f32
    %10 = vector.broadcast %cst_7 : f32 to vector<24x384xf32>
    %11 = arith.mulf %10, %7 : vector<24x384xf32>
    %12 = arith.select %9, %7, %11 : vector<24x384xi1>, vector<24x384xf32>
    %c1 = arith.constant 1 : index
    %c0_8 = arith.constant 0 : index
    %c0_9 = arith.constant 0 : index
    %13 = vector.load %arg2[%c1, %c0_8, %c0_9] : memref<4x24x25xf32, #tpu.memory_space<vmem>>, vector<1x24x24xf32>
    %14 = vector.shape_cast %13 : vector<1x24x24xf32> to vector<24x24xf32>
    %cst_10 = arith.constant dense<0.000000e+00> : vector<24x384xf32>
    %15 = tpu.matmul %14, %12, %cst_10 {dimension_numbers = #tpu.dot_dimension_numbers<[1], [0], [0], [1], [0, 0, 1, 1], [], []>} : vector<24x24xf32>, vector<24x384xf32>, vector<24x384xf32> -> vector<24x384xf32>
    %c1_11 = arith.constant 1 : index
    %c0_12 = arith.constant 0 : index
    %c24_13 = arith.constant 24 : index
    %16 = vector.load %arg2[%c1_11, %c0_12, %c24_13] : memref<4x24x25xf32, #tpu.memory_space<vmem>>, vector<1x24x1xf32>
    %17 = vector.shape_cast %16 : vector<1x24x1xf32> to vector<24x1xf32>
    %18 = vector.broadcast %17 : vector<24x1xf32> to vector<24x384xf32>
    %19 = arith.addf %15, %18 : vector<24x384xf32>
    %cst_14 = arith.constant 0.000000e+00 : f32
    %20 = vector.broadcast %cst_14 : f32 to vector<24x384xf32>
    %21 = arith.cmpf ogt, %19, %20 : vector<24x384xf32>
    %cst_15 = arith.constant 0.00999999977 : f32
    %22 = vector.broadcast %cst_15 : f32 to vector<24x384xf32>
    %23 = arith.mulf %22, %19 : vector<24x384xf32>
    %24 = arith.select %21, %19, %23 : vector<24x384xi1>, vector<24x384xf32>
    %c2 = arith.constant 2 : index
    %c0_16 = arith.constant 0 : index
    %c0_17 = arith.constant 0 : index
    %25 = vector.load %arg2[%c2, %c0_16, %c0_17] : memref<4x24x25xf32, #tpu.memory_space<vmem>>, vector<1x24x24xf32>
    %26 = vector.shape_cast %25 : vector<1x24x24xf32> to vector<24x24xf32>
    %cst_18 = arith.constant dense<0.000000e+00> : vector<24x384xf32>
    %27 = tpu.matmul %26, %24, %cst_18 {dimension_numbers = #tpu.dot_dimension_numbers<[1], [0], [0], [1], [0, 0, 1, 1], [], []>} : vector<24x24xf32>, vector<24x384xf32>, vector<24x384xf32> -> vector<24x384xf32>
    %c2_19 = arith.constant 2 : index
    %c0_20 = arith.constant 0 : index
    %c24_21 = arith.constant 24 : index
    %28 = vector.load %arg2[%c2_19, %c0_20, %c24_21] : memref<4x24x25xf32, #tpu.memory_space<vmem>>, vector<1x24x1xf32>
    %29 = vector.shape_cast %28 : vector<1x24x1xf32> to vector<24x1xf32>
    %30 = vector.broadcast %29 : vector<24x1xf32> to vector<24x384xf32>
    %31 = arith.addf %27, %30 : vector<24x384xf32>
    %cst_22 = arith.constant 0.000000e+00 : f32
    %32 = vector.broadcast %cst_22 : f32 to vector<24x384xf32>
    %33 = arith.cmpf ogt, %31, %32 : vector<24x384xf32>
    %cst_23 = arith.constant 0.00999999977 : f32
    %34 = vector.broadcast %cst_23 : f32 to vector<24x384xf32>
    %35 = arith.mulf %34, %31 : vector<24x384xf32>
    %36 = arith.select %33, %31, %35 : vector<24x384xi1>, vector<24x384xf32>
    %c3 = arith.constant 3 : index
    %c0_24 = arith.constant 0 : index
    %c0_25 = arith.constant 0 : index
    %37 = vector.load %arg2[%c3, %c0_24, %c0_25] : memref<4x24x25xf32, #tpu.memory_space<vmem>>, vector<1x24x1xf32>
    %38 = vector.shape_cast %37 : vector<1x24x1xf32> to vector<24x1xf32>
    %c3_26 = arith.constant 3 : index
    %c0_27 = arith.constant 0 : index
    %c24_28 = arith.constant 24 : index
    %39 = vector.load %arg2[%c3_26, %c0_27, %c24_28] : memref<4x24x25xf32, #tpu.memory_space<vmem>>, vector<1x1x1xf32>
    %40 = vector.shape_cast %39 : vector<1x1x1xf32> to vector<1x1xf32>
    %41 = vector.broadcast %38 : vector<24x1xf32> to vector<24x384xf32>
    %42 = arith.mulf %41, %36 : vector<24x384xf32>
    %cst_29 = arith.constant dense<0.000000e+00> : vector<384xf32>
    %43 = vector.multi_reduction <add>, %42, %cst_29 [0] : vector<24x384xf32> to vector<384xf32>
    %44 = vector.shape_cast %43 : vector<384xf32> to vector<1x384xf32>
    %45 = vector.broadcast %40 : vector<1x1xf32> to vector<1x384xf32>
    %46 = arith.addf %44, %45 : vector<1x384xf32>
    %c0_30 = arith.constant 0 : index
    %c0_31 = arith.constant 0 : index
    %47 = vector.load %arg3[%c0_30, %c0_31] : memref<1x384xf32, #tpu.memory_space<vmem>>, vector<1x384xf32>
    tpu.vector_store %arg3[%c0_30, %c0_31], %46 {strides = array<i32>} : memref<1x384xf32, #tpu.memory_space<vmem>>, vector<1x384xf32>,
    return
  }
  func.func @transform_0(%arg0: i32) -> (i32, i32) {
    %c0_i32 = arith.constant 0 : i32
    %c0_i32_0 = arith.constant 0 : i32
    return %c0_i32, %arg0 : i32, i32
  }
  func.func @transform_1(%arg0: i32) -> (i32, i32, i32) {
    %c0_i32 = arith.constant 0 : i32
    %c0_i32_0 = arith.constant 0 : i32
    %c0_i32_1 = arith.constant 0 : i32
    %c0_i32_2 = arith.constant 0 : i32
    return %c0_i32, %c0_i32_0, %c0_i32_1 : i32, i32, i32
  }
  func.func @transform_2(%arg0: i32) -> (i32, i32) {
    %c0_i32 = arith.constant 0 : i32
    %c0_i32_0 = arith.constant 0 : i32
    return %c0_i32, %arg0 : i32, i32
  }
}

</mosaic_0001>

<llo_original>
// kernel: tpu_custom_call.1
$region0: #{tpu_custom_call.1}
  #allocation0 [shape = 'u32[]', space=smem, size = 0x4, offset = 0x4, fixed_abs, tag = 'smem constant byte address 0x4 - core index']
  #allocation1 [shape = 'u32[144,128]{1,0:T(1,128)}', space=vmem, size = 0x12000, scoped, tag = 'internal scratch']
  %s0 = inlined_call_operand.hbm [shape: f32[4,384], index: 0, kind: input, shape index: {}]
  %s1 = inlined_call_operand.hbm [shape: f32[4,24,25], index: 1, kind: input, shape index: {}]
  %s2 = inlined_call_operand.hbm [shape: f32[1,384], index: 2, kind: output, shape index: {}]
  %s3 = sld [smem:[#allocation0]]
  $region26: #{tpu_custom_call.1} parent=0
    _
  %s5 = ssub.s32 1, %s3
  %s6 = scalar_select 0, %s5, %s3
  $region1: #{tpu_custom_call.1} parent=0
    #allocation2 [shape = 'u8[6144]{0}', space=vmem, size = 0x1800, scoped, tag = 'input window, operand 0, single buffered']
    #allocation3 [shape = 's32[1]{0}', space=sflag, size = 0x4, scoped, tag = 'scoped memory for tpu_custom_call.1']
    #allocation4 [shape = 's32[1]{0}', space=sflag, size = 0x4, scoped, tag = 'scoped memory for tpu_custom_call.1']
    #allocation5 [shape = 'u8[49152]{0}', space=vmem, size = 0xc000, scoped, tag = 'input window, operand 1, single buffered']
    #allocation6 [shape = 's32[1]{0}', space=sflag, size = 0x4, scoped, tag = 'scoped memory for tpu_custom_call.1']
    #allocation7 [shape = 'u8[1536]{0}', space=vmem, size = 0x800, scoped, tag = 'output window, operand 0, single buffered']
    %7 = vsyncpa [#allocation3], 0
    %8 = vsyncpa [#allocation6], 0
    %9 = vsyncpa [#allocation4], 0
    // Predicated region
    $region2: #{tpu_custom_call.1} parent=1 // pred_check
      _
    $region3: #{tpu_custom_call.1} parent=1 // pred_check_branch
      %11 = sbr.rel (0) target = $region5
    $region4: #{tpu_custom_call.1} parent=1 // pred_region
      %s13 = ssub.s32 192, 192
      %14 = vsyncadd [#allocation3], %s13
      %s16 = sshll.u32 [#allocation2], 4
      %s17 = int_to_ptr.vmem [resolvable:$true] %s16
      %19 = dma.hbm_to_vmem [thread:$0]  %s0, 192, %s17, [#allocation3]
    $region5: #{tpu_custom_call.1} parent=1 // pred_fallthru
      _
    // Predicated region
    $region6: #{tpu_custom_call.1} parent=1 // pred_check
      _
    $region7: #{tpu_custom_call.1} parent=1 // pred_check_branch
      %21 = sbr.rel (0) target = $region9
    $region8: #{tpu_custom_call.1} parent=1 // pred_region
      %s23 = ssub.s32 1536, 1536
      %24 = vsyncadd [#allocation6], %s23
      %s25 = sshll.u32 [#allocation5], 4
      %s26 = int_to_ptr.vmem [resolvable:$true] %s25
      %31 = dma.hbm_to_vmem [thread:$0]  %s1, 1536, %s26, [#allocation6], 128, 128, 8
    $region9: #{tpu_custom_call.1} parent=1 // pred_fallthru
      _
    // Predicated region
    $region10: #{tpu_custom_call.1} parent=1 // pred_check
      _
    $region11: #{tpu_custom_call.1} parent=1 // pred_check_branch
      %33 = sbr.rel (0) target = $region13
    $region12: #{tpu_custom_call.1} parent=1 // pred_region
      %34 = dma.done [#allocation3], 192
    $region13: #{tpu_custom_call.1} parent=1 // pred_fallthru
      _
    // Predicated region
    $region14: #{tpu_custom_call.1} parent=1 // pred_check
      _
    $region15: #{tpu_custom_call.1} parent=1 // pred_check_branch
      %36 = sbr.rel (0) target = $region17
    $region16: #{tpu_custom_call.1} parent=1 // pred_region
      %37 = dma.done [#allocation6], 1536
    $region17: #{tpu_custom_call.1} parent=1 // pred_fallthru
      _
    %v38 = vld [vmem:[#allocation2] sm:$0xff]
    %v39 = vld [vmem:[#allocation2 + $0x8] sm:$0xf]
    %v40 = vld [vmem:[#allocation5] sm:$0xff]
    %v41 = vld [vmem:[#allocation5 + $0x8] sm:$0xff]
    %v42 = vld [vmem:[#allocation5 + $0x10] sm:$0xff]
    %44 = vset.pattern.permute.xlu0 24
    %45 = vperm.xlu0 %44, %v40
    %v46 = vpop.permute.xlu0 %45
    %49 = vset.pattern.permute.xlu0 24
    %50 = vperm.xlu0 %49, %v41
    %v51 = vpop.permute.xlu0 %50
    %54 = vset.pattern.permute.xlu0 24
    %55 = vperm.xlu0 %54, %v42
    %v56 = vpop.permute.xlu0 %55
    %v60 = vcombine.high %v38, %v38
    %vm61 = vcmask 31744
    %v62 = vsel %vm61, %v40, 0
    %v64 = vsel %vm61, %v41, 0
    %v66 = vsel %vm61, %v42, 0
    %vm68 = vcmask 1043456
    %v69 = vsel %vm68, %v38, 0
    %v71 = vsel %vm68, %v60, 0
    %v73 = vsel %vm68, %v39, 0
    %75 = vmatprep.subr.mxu0 %v71
    %76 = vmatpush1.msra.mxu0 %v69
    %77 = vmatprep.subr.mxu0 0.0
    %78 = vmatpush1.msra.mxu0 0.0
    %79 = vmatprep.subr.mxu0 0.0
    %80 = vmatpush1.msra.mxu0 0.0
    %81 = vmatprep.subr.mxu0 0.0
    %82 = vmatpush1.msra.mxu0 0.0
    %83 = vmatprep.subr.mxu0 0.0
    %84 = vmatpush1.msra.mxu0 0.0
    %85 = vmatprep.subr.mxu0 0.0
    %86 = vmatpush1.msra.mxu0 0.0
    %87 = vmatprep.subr.mxu0 0.0
    %88 = vmatpush1.msra.mxu0 0.0
    %89 = vmatprep.subr.mxu0 0.0
    %90 = vmatpush1.msra.mxu0 0.0
    %91 = vmatprep.subr.mxu0 0.0
    %92 = vmatpush1.msra.mxu0 0.0
    %93 = vmatprep.subr.mxu0 0.0
    %94 = vmatpush1.msra.mxu0 0.0
    %95 = vmatprep.subr.mxu0 0.0
    %96 = vmatpush1.msra.mxu0 0.0
    %97 = vmatprep.subr.mxu0 0.0
    %98 = vmatpush1.msra.mxu0 0.0
    %99 = vmatprep.subr.mxu0 0.0
    %100 = vmatpush1.msra.mxu0 0.0
    %101 = vmatprep.subr.mxu0 0.0
    %102 = vmatpush1.msra.mxu0 0.0
    %103 = vmatprep.subr.mxu0 0.0
    %104 = vmatpush1.msra.mxu0 0.0
    %105 = vmatprep.subr.mxu0 0.0
    %106 = vmatpush1.msra.mxu0 0.0
    %107 = vmatprep.subr.mxu0 0.0
    %108 = vmatpush1.msra.mxu0 0.0
    %109 = vmatprep.subr.mxu0 0.0
    %110 = vmatpush1.msra.mxu0 0.0
    %111 = vmatprep.subr.mxu0 0.0
    %112 = vmatpush1.msra.mxu0 0.0
    %113 = vmatprep.subr.mxu0 0.0
    %114 = vmatpush1.msra.mxu0 0.0
    %115 = vmatprep.subr.mxu0 0.0
    %116 = vmatpush1.msra.mxu0 0.0
    %117 = vmatprep.subr.mxu0 0.0
    %118 = vmatpush1.msra.mxu0 0.0
    %119 = vmatprep.subr.mxu0 0.0
    %120 = vmatpush1.msra.mxu0 0.0
    %121 = vmatprep.subr.mxu0 0.0
    %122 = vmatpush1.msra.mxu0 0.0
    %123 = vmatprep.subr.mxu0 0.0
    %124 = vmatpush1.msra.mxu0 0.0
    %125 = vmatprep.subr.mxu0 0.0
    %126 = vmatpush1.msra.mxu0 0.0
    %127 = vmatprep.subr.mxu0 0.0
    %128 = vmatpush1.msra.mxu0 0.0
    %129 = vmatprep.subr.mxu0 0.0
    %130 = vmatpush1.msra.mxu0 0.0
    %131 = vmatprep.subr.mxu0 0.0
    %132 = vmatpush1.msra.mxu0 0.0
    %133 = vmatprep.subr.mxu0 0.0
    %134 = vmatpush1.msra.mxu0 0.0
    %135 = vmatprep.subr.mxu0 0.0
    %136 = vmatpush1.msra.mxu0 0.0
    %137 = vmatprep.subr.mxu0 0.0
    %138 = vmatpush1.msra.mxu0 0.0
    %139 = vmatprep.mubr.f32.mxu0 0.0
    %140 = vmatmul.mubr.f32.gmra.mrb[0].mxu0 %v62
    %v141 = vpop.f32.mrb[0].mxu0
    %v142 = vadd.f32 %v46, %v141
    %v143 = vpop.f32.mrb[0].mxu0
    %v144 = vadd.f32 %v46, %v143
    %145 = vmatprep.mubr.f32.mxu0 0.0
    %146 = vmatmul.mubr.f32.gmra.mrb[0].mxu0 %v64
    %v147 = vpop.f32.mrb[0].mxu0
    %v148 = vadd.f32 %v51, %v147
    %v149 = vpop.f32.mrb[0].mxu0
    %v150 = vadd.f32 %v51, %v149
    %151 = vmatprep.mubr.f32.mxu0 0.0
    %152 = vmatmul.mubr.f32.gmra.mrb[0].mxu0 %v66
    %v153 = vpop.f32.mrb[0].mxu0
    %v154 = vadd.f32 %v56, %v153
    %v155 = vpop.f32.mrb[0].mxu0
    %v156 = vadd.f32 %v56, %v155
    %157 = vdwg.mxu0
    %158 = vmatprep.subr.mxu0 0.0
    %159 = vmatpush1.msra.mxu0 %v73
    %160 = vmatprep.subr.mxu0 0.0
    %161 = vmatpush1.msra.mxu0 0.0
    %162 = vmatprep.subr.mxu0 0.0
    %163 = vmatpush1.msra.mxu0 0.0
    %164 = vmatprep.subr.mxu0 0.0
    %165 = vmatpush1.msra.mxu0 0.0
    %166 = vmatprep.subr.mxu0 0.0
    %167 = vmatpush1.msra.mxu0 0.0
    %168 = vmatprep.subr.mxu0 0.0
    %169 = vmatpush1.msra.mxu0 0.0
    %170 = vmatprep.subr.mxu0 0.0
    %171 = vmatpush1.msra.mxu0 0.0
    %172 = vmatprep.subr.mxu0 0.0
    %173 = vmatpush1.msra.mxu0 0.0
    %174 = vmatprep.subr.mxu0 0.0
    %175 = vmatpush1.msra.mxu0 0.0
    %176 = vmatprep.subr.mxu0 0.0
    %177 = vmatpush1.msra.mxu0 0.0
    %178 = vmatprep.subr.mxu0 0.0
    %179 = vmatpush1.msra.mxu0 0.0
    %180 = vmatprep.subr.mxu0 0.0
    %181 = vmatpush1.msra.mxu0 0.0
    %182 = vmatprep.subr.mxu0 0.0
    %183 = vmatpush1.msra.mxu0 0.0
    %184 = vmatprep.subr.mxu0 0.0
    %185 = vmatpush1.msra.mxu0 0.0
    %186 = vmatprep.subr.mxu0 0.0
    %187 = vmatpush1.msra.mxu0 0.0
    %188 = vmatprep.subr.mxu0 0.0
    %189 = vmatpush1.msra.mxu0 0.0
    %190 = vmatprep.subr.mxu0 0.0
    %191 = vmatpush1.msra.mxu0 0.0
    %192 = vmatprep.subr.mxu0 0.0
    %193 = vmatpush1.msra.mxu0 0.0
    %194 = vmatprep.subr.mxu0 0.0
    %195 = vmatpush1.msra.mxu0 0.0
    %196 = vmatprep.subr.mxu0 0.0
    %197 = vmatpush1.msra.mxu0 0.0
    %198 = vmatprep.subr.mxu0 0.0
    %199 = vmatpush1.msra.mxu0 0.0
    %200 = vmatprep.subr.mxu0 0.0
    %201 = vmatpush1.msra.mxu0 0.0
    %202 = vmatprep.subr.mxu0 0.0
    %203 = vmatpush1.msra.mxu0 0.0
    %204 = vmatprep.subr.mxu0 0.0
    %205 = vmatpush1.msra.mxu0 0.0
    %206 = vmatprep.subr.mxu0 0.0
    %207 = vmatpush1.msra.mxu0 0.0
    %208 = vmatprep.subr.mxu0 0.0
    %209 = vmatpush1.msra.mxu0 0.0
    %210 = vmatprep.subr.mxu0 0.0
    %211 = vmatpush1.msra.mxu0 0.0
    %212 = vmatprep.subr.mxu0 0.0
    %213 = vmatpush1.msra.mxu0 0.0
    %214 = vmatprep.subr.mxu0 0.0
    %215 = vmatpush1.msra.mxu0 0.0
    %216 = vmatprep.subr.mxu0 0.0
    %217 = vmatpush1.msra.mxu0 0.0
    %218 = vmatprep.subr.mxu0 0.0
    %219 = vmatpush1.msra.mxu0 0.0
    %220 = vmatprep.subr.mxu0 0.0
    %221 = vmatpush1.msra.mxu0 0.0
    %222 = vmatprep.mubr.f32.mxu0 0.0
    %223 = vmatmul.mubr.f32.gmra.mrb[0].mxu0 %v62
    %v224 = vpop.f32.mrb[0].mxu0
    %v225 = vadd.f32 %v46, %v224
    %v226 = vpop.f32.mrb[0].mxu0
    %227 = vmatprep.mubr.f32.mxu0 0.0
    %228 = vmatmul.mubr.f32.gmra.mrb[0].mxu0 %v64
    %v229 = vpop.f32.mrb[0].mxu0
    %v230 = vadd.f32 %v51, %v229
    %v231 = vpop.f32.mrb[0].mxu0
    %232 = vmatprep.mubr.f32.mxu0 0.0
    %233 = vmatmul.mubr.f32.gmra.mrb[0].mxu0 %v66
    %v234 = vpop.f32.mrb[0].mxu0
    %v235 = vadd.f32 %v56, %v234
    %v236 = vpop.f32.mrb[0].mxu0
    %237 = vdwg.mxu0
    %vm238 = vcmp.gt.f32.partialorder %v142, 0.0
    %vm239 = vcmp.gt.f32.partialorder %v144, 0.0
    %vm240 = vcmp.gt.f32.partialorder %v225, 0.0
    %vm241 = vcmp.gt.f32.partialorder %v148, 0.0
    %vm242 = vcmp.gt.f32.partialorder %v150, 0.0
    %vm243 = vcmp.gt.f32.partialorder %v230, 0.0
    %vm244 = vcmp.gt.f32.partialorder %v154, 0.0
    %vm245 = vcmp.gt.f32.partialorder %v156, 0.0
    %vm246 = vcmp.gt.f32.partialorder %v235, 0.0
    %v247 = vmul.f32 %v142, 0.01
    %v248 = vmul.f32 %v144, 0.01
    %v249 = vmul.f32 %v225, 0.01
    %v250 = vmul.f32 %v148, 0.01
    %v251 = vmul.f32 %v150, 0.01
    %v252 = vmul.f32 %v230, 0.01
    %v253 = vmul.f32 %v154, 0.01
    %v254 = vmul.f32 %v156, 0.01
    %v255 = vmul.f32 %v235, 0.01
    %v256 = vsel %vm238, %v142, %v247
    %v257 = vsel %vm239, %v144, %v248
    %v258 = vsel %vm240, %v225, %v249
    %v259 = vsel %vm241, %v148, %v250
    %v260 = vsel %vm242, %v150, %v251
    %v261 = vsel %vm243, %v230, %v252
    %v262 = vsel %vm244, %v154, %v253
    %v263 = vsel %vm245, %v156, %v254
    %v264 = vsel %vm246, %v235, %v255
    %s265 = scalar_lea.vmem [#allocation5], 24
    %v266 = vld [vmem:[%s265] sm:$0xff]
    %v267 = vld [vmem:[%s265 + $0x8] sm:$0xff]
    %v268 = vld [vmem:[%s265 + $0x10] sm:$0xff]
    %270 = vset.pattern.permute.xlu0 24
    %271 = vperm.xlu0 %270, %v266
    %v272 = vpop.permute.xlu0 %271
    %275 = vset.pattern.permute.xlu0 24
    %276 = vperm.xlu0 %275, %v267
    %v277 = vpop.permute.xlu0 %276
    %280 = vset.pattern.permute.xlu0 24
    %281 = vperm.xlu0 %280, %v268
    %v282 = vpop.permute.xlu0 %281
    %vm284 = vcmask 195584
    %v285 = vsel %vm284, %v266, 0
    %v287 = vsel %vm284, %v267, 0
    %v289 = vsel %vm284, %v268, 0
    %291 = vmatprep.subr.mxu0 %v257
    %292 = vmatpush1.msra.mxu0 %v256
    %293 = vmatprep.subr.mxu0 %v260
    %294 = vmatpush1.msra.mxu0 %v259
    %295 = vmatprep.subr.mxu0 %v263
    %296 = vmatpush1.msra.mxu0 %v262
    %297 = vmatprep.subr.mxu0 0.0
    %298 = vmatpush1.msra.mxu0 0.0
    %299 = vmatprep.subr.mxu0 0.0
    %300 = vmatpush1.msra.mxu0 0.0
    %301 = vmatprep.subr.mxu0 0.0
    %302 = vmatpush1.msra.mxu0 0.0
    %303 = vmatprep.subr.mxu0 0.0
    %304 = vmatpush1.msra.mxu0 0.0
    %305 = vmatprep.subr.mxu0 0.0
    %306 = vmatpush1.msra.mxu0 0.0
    %307 = vmatprep.subr.mxu0 0.0
    %308 = vmatpush1.msra.mxu0 0.0
    %309 = vmatprep.subr.mxu0 0.0
    %310 = vmatpush1.msra.mxu0 0.0
    %311 = vmatprep.subr.mxu0 0.0
    %312 = vmatpush1.msra.mxu0 0.0
    %313 = vmatprep.subr.mxu0 0.0
    %314 = vmatpush1.msra.mxu0 0.0
    %315 = vmatprep.subr.mxu0 0.0
    %316 = vmatpush1.msra.mxu0 0.0
    %317 = vmatprep.subr.mxu0 0.0
    %318 = vmatpush1.msra.mxu0 0.0
    %319 = vmatprep.subr.mxu0 0.0
    %320 = vmatpush1.msra.mxu0 0.0
    %321 = vmatprep.subr.mxu0 0.0
    %322 = vmatpush1.msra.mxu0 0.0
    %323 = vmatprep.subr.mxu0 0.0
    %324 = vmatpush1.msra.mxu0 0.0
    %325 = vmatprep.subr.mxu0 0.0
    %326 = vmatpush1.msra.mxu0 0.0
    %327 = vmatprep.subr.mxu0 0.0
    %328 = vmatpush1.msra.mxu0 0.0
    %329 = vmatprep.subr.mxu0 0.0
    %330 = vmatpush1.msra.mxu0 0.0
    %331 = vmatprep.subr.mxu0 0.0
    %332 = vmatpush1.msra.mxu0 0.0
    %333 = vmatprep.subr.mxu0 0.0
    %334 = vmatpush1.msra.mxu0 0.0
    %335 = vmatprep.subr.mxu0 0.0
    %336 = vmatpush1.msra.mxu0 0.0
    %337 = vmatprep.subr.mxu0 0.0
    %338 = vmatpush1.msra.mxu0 0.0
    %339 = vmatprep.subr.mxu0 0.0
    %340 = vmatpush1.msra.mxu0 0.0
    %341 = vmatprep.subr.mxu0 0.0
    %342 = vmatpush1.msra.mxu0 0.0
    %343 = vmatprep.subr.mxu0 0.0
    %344 = vmatpush1.msra.mxu0 0.0
    %345 = vmatprep.subr.mxu0 0.0
    %346 = vmatpush1.msra.mxu0 0.0
    %347 = vmatprep.subr.mxu0 0.0
    %348 = vmatpush1.msra.mxu0 0.0
    %349 = vmatprep.subr.mxu0 0.0
    %350 = vmatpush1.msra.mxu0 0.0
    %351 = vmatprep.subr.mxu0 0.0
    %352 = vmatpush1.msra.mxu0 0.0
    %353 = vmatprep.subr.mxu0 0.0
    %354 = vmatpush1.msra.mxu0 0.0
    %355 = vmatprep.mubr.f32.mxu0 0.0
    %356 = vmatmul.mubr.f32.gmra.mrb[0].mxu0 %v285
    %v357 = vpop.f32.mrb[0].mxu0
    %v358 = vadd.f32 %v272, %v357
    %v359 = vpop.f32.mrb[0].mxu0
    %v360 = vadd.f32 %v272, %v359
    %361 = vmatprep.mubr.f32.mxu0 0.0
    %362 = vmatmul.mubr.f32.gmra.mrb[0].mxu0 %v287
    %v363 = vpop.f32.mrb[0].mxu0
    %v364 = vadd.f32 %v277, %v363
    %v365 = vpop.f32.mrb[0].mxu0
    %v366 = vadd.f32 %v277, %v365
    %367 = vmatprep.mubr.f32.mxu0 0.0
    %368 = vmatmul.mubr.f32.gmra.mrb[0].mxu0 %v289
    %v369 = vpop.f32.mrb[0].mxu0
    %v370 = vadd.f32 %v282, %v369
    %v371 = vpop.f32.mrb[0].mxu0
    %v372 = vadd.f32 %v282, %v371
    %373 = vdwg.mxu0
    %374 = vmatprep.subr.mxu0 0.0
    %375 = vmatpush1.msra.mxu0 %v258
    %376 = vmatprep.subr.mxu0 0.0
    %377 = vmatpush1.msra.mxu0 %v261
    %378 = vmatprep.subr.mxu0 0.0
    %379 = vmatpush1.msra.mxu0 %v264
    %380 = vmatprep.subr.mxu0 0.0
    %381 = vmatpush1.msra.mxu0 0.0
    %382 = vmatprep.subr.mxu0 0.0
    %383 = vmatpush1.msra.mxu0 0.0
    %384 = vmatprep.subr.mxu0 0.0
    %385 = vmatpush1.msra.mxu0 0.0
    %386 = vmatprep.subr.mxu0 0.0
    %387 = vmatpush1.msra.mxu0 0.0
    %388 = vmatprep.subr.mxu0 0.0
    %389 = vmatpush1.msra.mxu0 0.0
    %390 = vmatprep.subr.mxu0 0.0
    %391 = vmatpush1.msra.mxu0 0.0
    %392 = vmatprep.subr.mxu0 0.0
    %393 = vmatpush1.msra.mxu0 0.0
    %394 = vmatprep.subr.mxu0 0.0
    %395 = vmatpush1.msra.mxu0 0.0
    %396 = vmatprep.subr.mxu0 0.0
    %397 = vmatpush1.msra.mxu0 0.0
    %398 = vmatprep.subr.mxu0 0.0
    %399 = vmatpush1.msra.mxu0 0.0
    %400 = vmatprep.subr.mxu0 0.0
    %401 = vmatpush1.msra.mxu0 0.0
    %402 = vmatprep.subr.mxu0 0.0
    %403 = vmatpush1.msra.mxu0 0.0
    %404 = vmatprep.subr.mxu0 0.0
    %405 = vmatpush1.msra.mxu0 0.0
    %406 = vmatprep.subr.mxu0 0.0
    %407 = vmatpush1.msra.mxu0 0.0
    %408 = vmatprep.subr.mxu0 0.0
    %409 = vmatpush1.msra.mxu0 0.0
    %410 = vmatprep.subr.mxu0 0.0
    %411 = vmatpush1.msra.mxu0 0.0
    %412 = vmatprep.subr.mxu0 0.0
    %413 = vmatpush1.msra.mxu0 0.0
    %414 = vmatprep.subr.mxu0 0.0
    %415 = vmatpush1.msra.mxu0 0.0
    %416 = vmatprep.subr.mxu0 0.0
    %417 = vmatpush1.msra.mxu0 0.0
    %418 = vmatprep.subr.mxu0 0.0
    %419 = vmatpush1.msra.mxu0 0.0
    %420 = vmatprep.subr.mxu0 0.0
    %421 = vmatpush1.msra.mxu0 0.0
    %422 = vmatprep.subr.mxu0 0.0
    %423 = vmatpush1.msra.mxu0 0.0
    %424 = vmatprep.subr.mxu0 0.0
    %425 = vmatpush1.msra.mxu0 0.0
    %426 = vmatprep.subr.mxu0 0.0
    %427 = vmatpush1.msra.mxu0 0.0
    %428 = vmatprep.subr.mxu0 0.0
    %429 = vmatpush1.msra.mxu0 0.0
    %430 = vmatprep.subr.mxu0 0.0
    %431 = vmatpush1.msra.mxu0 0.0
    %432 = vmatprep.subr.mxu0 0.0
    %433 = vmatpush1.msra.mxu0 0.0
    %434 = vmatprep.subr.mxu0 0.0
    %435 = vmatpush1.msra.mxu0 0.0
    %436 = vmatprep.subr.mxu0 0.0
    %437 = vmatpush1.msra.mxu0 0.0
    %438 = vmatprep.mubr.f32.mxu0 0.0
    %439 = vmatmul.mubr.f32.gmra.mrb[0].mxu0 %v285
    %v440 = vpop.f32.mrb[0].mxu0
    %v441 = vadd.f32 %v272, %v440
    %v442 = vpop.f32.mrb[0].mxu0
    %443 = vmatprep.mubr.f32.mxu0 0.0
    %444 = vmatmul.mubr.f32.gmra.mrb[0].mxu0 %v287
    %v445 = vpop.f32.mrb[0].mxu0
    %v446 = vadd.f32 %v277, %v445
    %v447 = vpop.f32.mrb[0].mxu0
    %448 = vmatprep.mubr.f32.mxu0 0.0
    %449 = vmatmul.mubr.f32.gmra.mrb[0].mxu0 %v289
    %v450 = vpop.f32.mrb[0].mxu0
    %v451 = vadd.f32 %v282, %v450
    %v452 = vpop.f32.mrb[0].mxu0
    %453 = vdwg.mxu0
    %vm454 = vcmp.gt.f32.partialorder %v358, 0.0
    %vm455 = vcmp.gt.f32.partialorder %v360, 0.0
    %vm456 = vcmp.gt.f32.partialorder %v441, 0.0
    %vm457 = vcmp.gt.f32.partialorder %v364, 0.0
    %vm458 = vcmp.gt.f32.partialorder %v366, 0.0
    %vm459 = vcmp.gt.f32.partialorder %v446, 0.0
    %vm460 = vcmp.gt.f32.partialorder %v370, 0.0
    %vm461 = vcmp.gt.f32.partialorder %v372, 0.0
    %vm462 = vcmp.gt.f32.partialorder %v451, 0.0
    %v463 = vmul.f32 %v358, 0.01
    %v464 = vmul.f32 %v360, 0.01
    %v465 = vmul.f32 %v441, 0.01
    %v466 = vmul.f32 %v364, 0.01
    %v467 = vmul.f32 %v366, 0.01
    %v468 = vmul.f32 %v446, 0.01
    %v469 = vmul.f32 %v370, 0.01
    %v470 = vmul.f32 %v372, 0.01
    %v471 = vmul.f32 %v451, 0.01
    %v472 = vsel %vm454, %v358, %v463
    %v473 = vsel %vm455, %v360, %v464
    %v474 = vsel %vm456, %v441, %v465
    %v475 = vsel %vm457, %v364, %v466
    %v476 = vsel %vm458, %v366, %v467
    %v477 = vsel %vm459, %v446, %v468
    %v478 = vsel %vm460, %v370, %v469
    %v479 = vsel %vm461, %v372, %v470
    %v480 = vsel %vm462, %v451, %v471
    %s481 = scalar_lea.vmem [#allocation5], 48
    %v482 = vld [vmem:[%s481] sm:$0xff]
    %v483 = vld [vmem:[%s481 + $0x8] sm:$0xff]
    %v484 = vld [vmem:[%s481 + $0x10] sm:$0xff]
    %486 = vset.pattern.permute.xlu0 24
    %487 = vperm.xlu0 %486, %v482
    %v488 = vpop.permute.xlu0 %487
    %491 = vset.pattern.permute.xlu0 24
    %492 = vperm.xlu0 %491, %v483
    %v493 = vpop.permute.xlu0 %492
    %496 = vset.pattern.permute.xlu0 24
    %497 = vperm.xlu0 %496, %v484
    %v498 = vpop.permute.xlu0 %497
    %v500 = vsel %vm284, %v482, 0
    %v502 = vsel %vm284, %v483, 0
    %v504 = vsel %vm284, %v484, 0
    %506 = vmatprep.subr.mxu0 %v473
    %507 = vmatpush1.msra.mxu0 %v472
    %508 = vmatprep.subr.mxu0 %v476
    %509 = vmatpush1.msra.mxu0 %v475
    %510 = vmatprep.subr.mxu0 %v479
    %511 = vmatpush1.msra.mxu0 %v478
    %512 = vmatprep.subr.mxu0 0.0
    %513 = vmatpush1.msra.mxu0 0.0
    %514 = vmatprep.subr.mxu0 0.0
    %515 = vmatpush1.msra.mxu0 0.0
    %516 = vmatprep.subr.mxu0 0.0
    %517 = vmatpush1.msra.mxu0 0.0
    %518 = vmatprep.subr.mxu0 0.0
    %519 = vmatpush1.msra.mxu0 0.0
    %520 = vmatprep.subr.mxu0 0.0
    %521 = vmatpush1.msra.mxu0 0.0
    %522 = vmatprep.subr.mxu0 0.0
    %523 = vmatpush1.msra.mxu0 0.0
    %524 = vmatprep.subr.mxu0 0.0
    %525 = vmatpush1.msra.mxu0 0.0
    %526 = vmatprep.subr.mxu0 0.0
    %527 = vmatpush1.msra.mxu0 0.0
    %528 = vmatprep.subr.mxu0 0.0
    %529 = vmatpush1.msra.mxu0 0.0
    %530 = vmatprep.subr.mxu0 0.0
    %531 = vmatpush1.msra.mxu0 0.0
    %532 = vmatprep.subr.mxu0 0.0
    %533 = vmatpush1.msra.mxu0 0.0
    %534 = vmatprep.subr.mxu0 0.0
    %535 = vmatpush1.msra.mxu0 0.0
    %536 = vmatprep.subr.mxu0 0.0
    %537 = vmatpush1.msra.mxu0 0.0
    %538 = vmatprep.subr.mxu0 0.0
    %539 = vmatpush1.msra.mxu0 0.0
    %540 = vmatprep.subr.mxu0 0.0
    %541 = vmatpush1.msra.mxu0 0.0
    %542 = vmatprep.subr.mxu0 0.0
    %543 = vmatpush1.msra.mxu0 0.0
    %544 = vmatprep.subr.mxu0 0.0
    %545 = vmatpush1.msra.mxu0 0.0
    %546 = vmatprep.subr.mxu0 0.0
    %547 = vmatpush1.msra.mxu0 0.0
    %548 = vmatprep.subr.mxu0 0.0
    %549 = vmatpush1.msra.mxu0 0.0
    %550 = vmatprep.subr.mxu0 0.0
    %551 = vmatpush1.msra.mxu0 0.0
    %552 = vmatprep.subr.mxu0 0.0
    %553 = vmatpush1.msra.mxu0 0.0
    %554 = vmatprep.subr.mxu0 0.0
    %555 = vmatpush1.msra.mxu0 0.0
    %556 = vmatprep.subr.mxu0 0.0
    %557 = vmatpush1.msra.mxu0 0.0
    %558 = vmatprep.subr.mxu0 0.0
    %559 = vmatpush1.msra.mxu0 0.0
    %560 = vmatprep.subr.mxu0 0.0
    %561 = vmatpush1.msra.mxu0 0.0
    %562 = vmatprep.subr.mxu0 0.0
    %563 = vmatpush1.msra.mxu0 0.0
    %564 = vmatprep.subr.mxu0 0.0
    %565 = vmatpush1.msra.mxu0 0.0
    %566 = vmatprep.subr.mxu0 0.0
    %567 = vmatpush1.msra.mxu0 0.0
    %568 = vmatprep.subr.mxu0 0.0
    %569 = vmatpush1.msra.mxu0 0.0
    %570 = vmatprep.mubr.f32.mxu0 0.0
    %571 = vmatmul.mubr.f32.gmra.mrb[0].mxu0 %v500
    %v572 = vpop.f32.mrb[0].mxu0
    %v573 = vadd.f32 %v488, %v572
    %v574 = vpop.f32.mrb[0].mxu0
    %v575 = vadd.f32 %v488, %v574
    %576 = vmatprep.mubr.f32.mxu0 0.0
    %577 = vmatmul.mubr.f32.gmra.mrb[0].mxu0 %v502
    %v578 = vpop.f32.mrb[0].mxu0
    %v579 = vadd.f32 %v493, %v578
    %v580 = vpop.f32.mrb[0].mxu0
    %v581 = vadd.f32 %v493, %v580
    %582 = vmatprep.mubr.f32.mxu0 0.0
    %583 = vmatmul.mubr.f32.gmra.mrb[0].mxu0 %v504
    %v584 = vpop.f32.mrb[0].mxu0
    %v585 = vadd.f32 %v498, %v584
    %v586 = vpop.f32.mrb[0].mxu0
    %v587 = vadd.f32 %v498, %v586
    %588 = vdwg.mxu0
    %589 = vmatprep.subr.mxu0 0.0
    %590 = vmatpush1.msra.mxu0 %v474
    %591 = vmatprep.subr.mxu0 0.0
    %592 = vmatpush1.msra.mxu0 %v477
    %593 = vmatprep.subr.mxu0 0.0
    %594 = vmatpush1.msra.mxu0 %v480
    %595 = vmatprep.subr.mxu0 0.0
    %596 = vmatpush1.msra.mxu0 0.0
    %597 = vmatprep.subr.mxu0 0.0
    %598 = vmatpush1.msra.mxu0 0.0
    %599 = vmatprep.subr.mxu0 0.0
    %600 = vmatpush1.msra.mxu0 0.0
    %601 = vmatprep.subr.mxu0 0.0
    %602 = vmatpush1.msra.mxu0 0.0
    %603 = vmatprep.subr.mxu0 0.0
    %604 = vmatpush1.msra.mxu0 0.0
    %605 = vmatprep.subr.mxu0 0.0
    %606 = vmatpush1.msra.mxu0 0.0
    %607 = vmatprep.subr.mxu0 0.0
    %608 = vmatpush1.msra.mxu0 0.0
    %609 = vmatprep.subr.mxu0 0.0
    %610 = vmatpush1.msra.mxu0 0.0
    %611 = vmatprep.subr.mxu0 0.0
    %612 = vmatpush1.msra.mxu0 0.0
    %613 = vmatprep.subr.mxu0 0.0
    %614 = vmatpush1.msra.mxu0 0.0
    %615 = vmatprep.subr.mxu0 0.0
    %616 = vmatpush1.msra.mxu0 0.0
    %617 = vmatprep.subr.mxu0 0.0
    %618 = vmatpush1.msra.mxu0 0.0
    %619 = vmatprep.subr.mxu0 0.0
    %620 = vmatpush1.msra.mxu0 0.0
    %621 = vmatprep.subr.mxu0 0.0
    %622 = vmatpush1.msra.mxu0 0.0
    %623 = vmatprep.subr.mxu0 0.0
    %624 = vmatpush1.msra.mxu0 0.0
    %625 = vmatprep.subr.mxu0 0.0
    %626 = vmatpush1.msra.mxu0 0.0
    %627 = vmatprep.subr.mxu0 0.0
    %628 = vmatpush1.msra.mxu0 0.0
    %629 = vmatprep.subr.mxu0 0.0
    %630 = vmatpush1.msra.mxu0 0.0
    %631 = vmatprep.subr.mxu0 0.0
    %632 = vmatpush1.msra.mxu0 0.0
    %633 = vmatprep.subr.mxu0 0.0
    %634 = vmatpush1.msra.mxu0 0.0
    %635 = vmatprep.subr.mxu0 0.0
    %636 = vmatpush1.msra.mxu0 0.0
    %637 = vmatprep.subr.mxu0 0.0
    %638 = vmatpush1.msra.mxu0 0.0
    %639 = vmatprep.subr.mxu0 0.0
    %640 = vmatpush1.msra.mxu0 0.0
    %641 = vmatprep.subr.mxu0 0.0
    %642 = vmatpush1.msra.mxu0 0.0
    %643 = vmatprep.subr.mxu0 0.0
    %644 = vmatpush1.msra.mxu0 0.0
    %645 = vmatprep.subr.mxu0 0.0
    %646 = vmatpush1.msra.mxu0 0.0
    %647 = vmatprep.subr.mxu0 0.0
    %648 = vmatpush1.msra.mxu0 0.0
    %649 = vmatprep.subr.mxu0 0.0
    %650 = vmatpush1.msra.mxu0 0.0
    %651 = vmatprep.subr.mxu0 0.0
    %652 = vmatpush1.msra.mxu0 0.0
    %653 = vmatprep.mubr.f32.mxu0 0.0
    %654 = vmatmul.mubr.f32.gmra.mrb[0].mxu0 %v500
    %v655 = vpop.f32.mrb[0].mxu0
    %v656 = vadd.f32 %v488, %v655
    %v657 = vpop.f32.mrb[0].mxu0
    %658 = vmatprep.mubr.f32.mxu0 0.0
    %659 = vmatmul.mubr.f32.gmra.mrb[0].mxu0 %v502
    %v660 = vpop.f32.mrb[0].mxu0
    %v661 = vadd.f32 %v493, %v660
    %v662 = vpop.f32.mrb[0].mxu0
    %663 = vmatprep.mubr.f32.mxu0 0.0
    %664 = vmatmul.mubr.f32.gmra.mrb[0].mxu0 %v504
    %v665 = vpop.f32.mrb[0].mxu0
    %v666 = vadd.f32 %v498, %v665
    %v667 = vpop.f32.mrb[0].mxu0
    %668 = vdwg.mxu0
    %vm669 = vcmp.gt.f32.partialorder %v573, 0.0
    %vm670 = vcmp.gt.f32.partialorder %v575, 0.0
    %vm671 = vcmp.gt.f32.partialorder %v656, 0.0
    %vm672 = vcmp.gt.f32.partialorder %v579, 0.0
    %vm673 = vcmp.gt.f32.partialorder %v581, 0.0
    %vm674 = vcmp.gt.f32.partialorder %v661, 0.0
    %vm675 = vcmp.gt.f32.partialorder %v585, 0.0
    %vm676 = vcmp.gt.f32.partialorder %v587, 0.0
    %vm677 = vcmp.gt.f32.partialorder %v666, 0.0
    %v678 = vmul.f32 %v573, 0.01
    %v679 = vmul.f32 %v575, 0.01
    %v680 = vmul.f32 %v656, 0.01
    %v681 = vmul.f32 %v579, 0.01
    %v682 = vmul.f32 %v581, 0.01
    %v683 = vmul.f32 %v661, 0.01
    %v684 = vmul.f32 %v585, 0.01
    %v685 = vmul.f32 %v587, 0.01
    %v686 = vmul.f32 %v666, 0.01
    %v687 = vsel %vm669, %v573, %v678
    %v688 = vsel %vm670, %v575, %v679
    %v689 = vsel %vm671, %v656, %v680
    %v690 = vsel %vm672, %v579, %v681
    %v691 = vsel %vm673, %v581, %v682
    %v692 = vsel %vm674, %v661, %v683
    %v693 = vsel %vm675, %v585, %v684
    %v694 = vsel %vm676, %v587, %v685
    %v695 = vsel %vm677, %v666, %v686
    %s696 = scalar_lea.vmem [#allocation5], 72
    %v697 = vld [vmem:[%s696] sm:$0xff]
    %v698 = vld [vmem:[%s696 + $0x8] sm:$0xff]
    %v699 = vld [vmem:[%s696 + $0x10] sm:$0xff]
    %v700 = vld [vmem:[%s696] sm:$0x1]
    %702 = vset.pattern.permute.xlu0 0
    %703 = vperm.xlu0 %702, %v697
    %v704 = vpop.permute.xlu0 %703
    %707 = vset.pattern.permute.xlu0 0
    %708 = vperm.xlu0 %707, %v698
    %v709 = vpop.permute.xlu0 %708
    %712 = vset.pattern.permute.xlu0 0
    %713 = vperm.xlu0 %712, %v699
    %v714 = vpop.permute.xlu0 %713
    %v716 = vmul.f32 %v704, %v687
    %v717 = vmul.f32 %v704, %v688
    %v718 = vmul.f32 %v704, %v689
    %v719 = vmul.f32 %v709, %v690
    %v720 = vmul.f32 %v709, %v691
    %v721 = vmul.f32 %v709, %v692
    %v722 = vmul.f32 %v714, %v693
    %v723 = vmul.f32 %v714, %v694
    %v724 = vmul.f32 %v714, %v695
    %v725 = vadd.f32 %v716, %v719
    %v726 = vadd.f32 %v725, %v722
    %v727 = vrot.slane %v726, 4
    %v728 = vadd.f32 %v726, %v727
    %v729 = vrot.slane %v728, 2
    %v730 = vadd.f32 %v728, %v729
    %v731 = vrot.slane %v730, 1
    %v732 = vadd.f32 %v730, %v731
    %v733 = vadd.f32 %v717, %v720
    %v734 = vadd.f32 %v733, %v723
    %v735 = vrot.slane %v734, 4
    %v736 = vadd.f32 %v734, %v735
    %v737 = vrot.slane %v736, 2
    %v738 = vadd.f32 %v736, %v737
    %v739 = vrot.slane %v738, 1
    %v740 = vadd.f32 %v738, %v739
    %v741 = vadd.f32 %v718, %v721
    %v742 = vadd.f32 %v741, %v724
    %v743 = vrot.slane %v742, 4
    %v744 = vadd.f32 %v742, %v743
    %v745 = vrot.slane %v744, 2
    %v746 = vadd.f32 %v744, %v745
    %v747 = vrot.slane %v746, 1
    %v748 = vadd.f32 %v746, %v747
    %750 = vset.pattern.permute.xlu0 24
    %751 = vperm.xlu0 %750, %v700
    %v752 = vpop.permute.xlu0 %751
    %v754 = vadd.f32 %v732, %v752
    %v755 = vadd.f32 %v740, %v752
    %v756 = vadd.f32 %v748, %v752
    %v760 = vcombine.low %v754, %v755
    %v762 = vunpack.c.l.s4 1966171168
    %v763 = vunpack.c.0.s8 %v762
    %v764 = vlaneseq
    %v765 = vshrl.u32 %v764, 7
    %v766 = vsub.s32 %v763, %v765
    %v767 = vrot.slane %v760, %v766
    %v769 = vunpack.c.l.s4 1966171168
    %v770 = vunpack.c.0.s8 %v769
    %v771 = vlaneseq
    %v772 = vshrl.u32 %v771, 7
    %v773 = vsub.s32 %v770, %v772
    %v774 = vrot.slane %v756, %v773
    %v775 = vcombine.low %v767, %v774
    %v777 = vunpack.c.l.s4 1966171168
    %v778 = vunpack.c.0.s8 %v777
    %v779 = vlaneseq
    %v780 = vshrl.u32 %v779, 7
    %v781 = vsub.s32 %v778, %v780
    %v782 = vrot.slane %v775, %v781
    %v784 = vlaneseq
    %vm785 = vcmp.ge.s32.totalorder %v784, 0
    %vm786 = vcmp.lt.s32.totalorder %v784, 384
    %vm787 = vmand %vm785, %vm786
    %788 = vst.msk [vmem:[#allocation7] sm:$0x7] %vm787, %v782
    // Predicated region
    $region18: #{tpu_custom_call.1} parent=1 // pred_check
      _
    $region19: #{tpu_custom_call.1} parent=1 // pred_check_branch
      %790 = sbr.rel (0) target = $region21
    $region20: #{tpu_custom_call.1} parent=1 // pred_region
      %s792 = ssub.s32 48, 48
      %793 = vsyncadd [#allocation4], %s792
      %s795 = sshll.u32 [#allocation7], 4
      %s796 = int_to_ptr.vmem [resolvable:$true] %s795
      %798 = dma.vmem_to_hbm [thread:$0]  %s796, 48, %s2, [#allocation4]
    $region21: #{tpu_custom_call.1} parent=1 // pred_fallthru
      _
    // Predicated region
    $region22: #{tpu_custom_call.1} parent=1 // pred_check
      _
    $region23: #{tpu_custom_call.1} parent=1 // pred_check_branch
      %800 = sbr.rel (0) target = $region25
    $region24: #{tpu_custom_call.1} parent=1 // pred_region
      %801 = dma.done [#allocation4], 48
    $region25: #{tpu_custom_call.1} parent=1 // pred_fallthru
      _
    %802 = vsyncpa [#allocation3], 1
    %803 = vsyncpa [#allocation6], 1
    %804 = vsyncpa [#allocation4], 1

</llo_original>
